<compile_context>
chip_gen: v5e
topology: v5e:2x2
jax: 0.10.0
libtpu: 0.0.40
codegen_flags: <defaults>
</compile_context>

<pallas_src>
import jax
import jax.numpy as jnp
from jax import lax
from jax.experimental import pallas as pl
from jax.experimental.pallas import tpu as pltpu


def _round_up(n, m):
    return ((n + m - 1) // m) * m


def _mlp_kernel(x_ref, w1_ref, b1_ref, w2r_ref, b2_ref, o_ref):
    # hidden = LeakyReLU(x @ W1 + b1)   (negative_slope = 0.01, torch default)
    h = jnp.dot(x_ref[...], w1_ref[...], preferred_element_type=jnp.float32)
    h = h + b1_ref[...]                                   # (1, H) broadcasts over rows
    h = jnp.where(h > 0, h, jnp.float32(0.01) * h)        # (TM, H)
    # Second Linear (out_features=1): single MXU contraction producing the lane-dense row
    # (1, TM) directly — contraction over h's lane axis, no XLU reduce / relayout.
    y_row = lax.dot_general(
        w2r_ref[...], h,
        dimension_numbers=(((1,), (1,)), ((), ())),
        preferred_element_type=jnp.float32,
    )                                                      # (1, TM)
    o_ref[...] = (y_row + b2_ref[...]).astype(o_ref.dtype)


def _vmem_capacity_bytes():
    try:
        return int(pltpu.get_tpu_info().vmem_capacity_bytes)
    except Exception:
        return 64 << 20  # conservative fallback (v7x-sized)


def _choose_batch_tile(b_pad, d_pad, h_pad, budget_bytes):
    """Largest batch tile TM (multiple of 128, divides b_pad) whose working set fits budget."""
    # Per-row cost (f32, layout-padded dims): x double-buffered + hidden scratch + out row.
    per_row = 4 * (2 * d_pad + h_pad + 16)
    # Resident fixed cost: W1 double-buffered + (8-sublane-padded) bias / w2 rows + b2.
    fixed = 4 * (2 * d_pad * h_pad + 4 * 8 * h_pad + 2 * 8 * 128)
    avail = max(budget_bytes - fixed, per_row * 128)
    tm_cap = max(128, (avail // per_row) // 128 * 128)
    tm_cap = min(tm_cap, 2048)                       # pipelining sweet spot
    if b_pad > 512:
        # keep >= 4 tiles: both v7x TensorCores busy + real DMA/compute overlap
        tm_cap = min(tm_cap, max(128, (b_pad // 4) // 128 * 128))
    # Largest multiple of 128 that divides b_pad and is <= tm_cap (avoids padding to TM).
    tm = 128
    cand = 128
    while cand <= tm_cap:
        if b_pad % cand == 0:
            tm = cand
        cand += 128
    return tm


def flexible_neural_net(x, w1, b1, w2, b2):
    """Eval-mode forward. x: [B, D] f32; w1: [D, H]; b1: [H]; w2: [H, 1]; b2: [1] -> [B, 1]."""
    B, D = x.shape
    H = w1.shape[1]

    # Layout-padded dims (Mosaic pads last dim to 128 lanes, second-minor to 8 sublanes).
    D_pad = _round_up(D, 128)
    H_pad = _round_up(H, 128)

    # Generation-aware budgets: cap at 3/4 of physical VMEM (96 MiB on v5e/v6e, 48 MiB on v7x).
    vmem_cap = min(100 << 20, 3 * _vmem_capacity_bytes() // 4)
    tile_budget = min(48 << 20, vmem_cap // 2)

    # Pad batch only to a multiple of 128 (cheap, lane/sublane aligned) — never to TM.
    B_pad = _round_up(max(B, 1), 128)
    if B_pad != B:
        x = jnp.pad(x, ((0, B_pad - B), (0, 0)))

    TM = _choose_batch_tile(B_pad, D_pad, H_pad, tile_budget)
    n_tiles = B_pad // TM

    b1_row = b1.reshape(1, H)
    w2_row = w2.reshape(1, H)      # pre-transposed row for the (1,H)x(TM,H) second layer
    b2_row = b2.reshape(1, 1)

    # VMEM need with padded dims: double-buffered x/out tiles, double-buffered resident
    # weights, and the hidden-activation scratch.
    vmem_need = 4 * (
        2 * TM * D_pad          # x tile, double-buffered
        + 2 * 8 * TM            # output row (8-sublane padded), double-buffered
        + 2 * D_pad * H_pad     # W1, double-buffered
        + 4 * 8 * H_pad         # b1 + w2 rows (8-sublane padded), double-buffered
        + 2 * 8 * 128           # b2
        + TM * H_pad            # hidden activation
    )
    vmem_limit = int(min(max(int(vmem_need * 1.5), 8 << 20), vmem_cap))

    cost = pl.CostEstimate(
        flops=2 * B_pad * D * H + 2 * B_pad * H,
        transcendentals=0,
        bytes_accessed=4 * (B_pad * D + D * H + 2 * H + B_pad + 1),
    )

    out_row = pl.pallas_call(
        _mlp_kernel,
        out_shape=jax.ShapeDtypeStruct((1, B_pad), jnp.float32),
        grid=(n_tiles,),
        in_specs=[
            pl.BlockSpec((TM, D), lambda i: (i, 0)),      # x: tiled over batch, pipelined
            pl.BlockSpec((D, H), lambda i: (0, 0)),       # W1: VMEM-resident across tiles
            pl.BlockSpec((1, H), lambda i: (0, 0)),       # b1
            pl.BlockSpec((1, H), lambda i: (0, 0)),       # w2 (row)
            pl.BlockSpec((1, 1), lambda i: (0, 0)),       # b2
        ],
        out_specs=pl.BlockSpec((1, TM), lambda i: (0, i)),  # lane-dense output row
        compiler_params=pltpu.CompilerParams(
            dimension_semantics=("parallel",),
            vmem_limit_bytes=vmem_limit,
        ),
        cost_estimate=cost,
    )(x, w1, b1_row, w2_row, b2_row)

    return out_row.reshape(B_pad, 1)[:B]


def _reference(x, w1, b1, w2, b2):
    h = x @ w1 + b1
    h = jnp.where(h > 0, h, 0.01 * h)
    return h @ w2 + b2


if __name__ == "__main__":
    # Small shapes consistent with the module: batch=8, input_dim=32, n_hidden=32.
    batch, input_dim, n_hidden = 8, 32, 32

    key = jax.random.PRNGKey(0)
    kx, kw1, kb1, kw2, kb2 = jax.random.split(key, 5)

    x = jax.random.normal(kx, (batch, input_dim), dtype=jnp.float32)

    # Deterministic param init mimicking torch.nn.Linear's U(-1/sqrt(fan_in), 1/sqrt(fan_in)).
    lim1 = 1.0 / (input_dim ** 0.5)
    w1 = jax.random.uniform(kw1, (input_dim, n_hidden), jnp.float32, -lim1, lim1)
    b1 = jax.random.uniform(kb1, (n_hidden,), jnp.float32, -lim1, lim1)
    lim2 = 1.0 / (n_hidden ** 0.5)
    w2 = jax.random.uniform(kw2, (n_hidden, 1), jnp.float32, -lim2, lim2)
    b2 = jax.random.uniform(kb2, (1,), jnp.float32, -lim2, lim2)

    out = flexible_neural_net(x, w1, b1, w2, b2)
    out = jax.block_until_ready(out)

    ref = _reference(x, w1, b1, w2, b2)
    assert out.shape == (batch, 1), out.shape
    assert jnp.allclose(out, ref, atol=1e-5, rtol=1e-5), "mismatch vs reference"

    print("KERNEL_OK")
</pallas_src>

<mosaic_0001>
module attributes {stable_mosaic.version = 11 : i64} {
  func.func @_mlp_kernel(%arg0: i32, %arg1: memref<128x32xf32, #tpu.memory_space<vmem>>, %arg2: memref<32x32xf32, #tpu.memory_space<vmem>>, %arg3: memref<1x32xf32, #tpu.memory_space<vmem>>, %arg4: memref<1x32xf32, #tpu.memory_space<vmem>>, %arg5: memref<1x1xf32, #tpu.memory_space<vmem>>, %arg6: memref<1x128xf32, #tpu.memory_space<vmem>>) attributes {dimension_semantics = [#tpu.dimension_semantics<parallel>], iteration_bounds = array<i64: 1>, scalar_prefetch = 0 : i64, scratch_operands = 0 : i64, tpu.core_type = #tpu.core_type<tc>, window_params = [{transform_indices = @transform_0, window_bounds = array<i64: 128, 32>}, {pipeline_mode = #tpu.pipeline_mode<synchronous>, transform_indices = @transform_1, window_bounds = array<i64: 32, 32>}, {pipeline_mode = #tpu.pipeline_mode<synchronous>, transform_indices = @transform_2, window_bounds = array<i64: 1, 32>}, {pipeline_mode = #tpu.pipeline_mode<synchronous>, transform_indices = @transform_3, window_bounds = array<i64: 1, 32>}, {pipeline_mode = #tpu.pipeline_mode<synchronous>, transform_indices = @transform_4, window_bounds = array<i64: 1, 1>}, {transform_indices = @transform_5, window_bounds = array<i64: 1, 128>}]} {
    %c0 = arith.constant 0 : index
    %c0_0 = arith.constant 0 : index
    %0 = vector.load %arg1[%c0, %c0_0] : memref<128x32xf32, #tpu.memory_space<vmem>>, vector<128x32xf32>
    %c0_1 = arith.constant 0 : index
    %c0_2 = arith.constant 0 : index
    %1 = vector.load %arg2[%c0_1, %c0_2] : memref<32x32xf32, #tpu.memory_space<vmem>>, vector<32x32xf32>
    %cst = arith.constant dense<0.000000e+00> : vector<128x32xf32>
    %2 = tpu.matmul %0, %1, %cst {dimension_numbers = #tpu.dot_dimension_numbers<[1], [0], [0], [1], [0, 0, 1, 1], [], []>} : vector<128x32xf32>, vector<32x32xf32>, vector<128x32xf32> -> vector<128x32xf32>
    %c0_3 = arith.constant 0 : index
    %c0_4 = arith.constant 0 : index
    %3 = vector.load %arg3[%c0_3, %c0_4] : memref<1x32xf32, #tpu.memory_space<vmem>>, vector<1x32xf32>
    %4 = vector.broadcast %3 : vector<1x32xf32> to vector<128x32xf32>
    %5 = arith.addf %2, %4 : vector<128x32xf32>
    %cst_5 = arith.constant 0.000000e+00 : f32
    %6 = vector.broadcast %cst_5 : f32 to vector<128x32xf32>
    %7 = arith.cmpf ogt, %5, %6 : vector<128x32xf32>
    %cst_6 = arith.constant 0.00999999977 : f32
    %8 = vector.broadcast %cst_6 : f32 to vector<128x32xf32>
    %9 = arith.mulf %8, %5 : vector<128x32xf32>
    %10 = arith.select %7, %5, %9 : vector<128x32xi1>, vector<128x32xf32>
    %c0_7 = arith.constant 0 : index
    %c0_8 = arith.constant 0 : index
    %11 = vector.load %arg4[%c0_7, %c0_8] : memref<1x32xf32, #tpu.memory_space<vmem>>, vector<1x32xf32>
    %cst_9 = arith.constant dense<0.000000e+00> : vector<1x128xf32>
    %12 = tpu.matmul %11, %10, %cst_9 {dimension_numbers = #tpu.dot_dimension_numbers<[1], [1], [0], [0], [0, 0, 1, 0], [], []>} : vector<1x32xf32>, vector<128x32xf32>, vector<1x128xf32> -> vector<1x128xf32>
    %c0_10 = arith.constant 0 : index
    %c0_11 = arith.constant 0 : index
    %13 = vector.load %arg5[%c0_10, %c0_11] : memref<1x1xf32, #tpu.memory_space<vmem>>, vector<1x1xf32>
    %14 = vector.broadcast %13 : vector<1x1xf32> to vector<1x128xf32>
    %15 = arith.addf %12, %14 : vector<1x128xf32>
    %c0_12 = arith.constant 0 : index
    %c0_13 = arith.constant 0 : index
    %16 = vector.load %arg6[%c0_12, %c0_13] : memref<1x128xf32, #tpu.memory_space<vmem>>, vector<1x128xf32>
    tpu.vector_store %arg6[%c0_12, %c0_13], %15 {strides = array<i32>} : memref<1x128xf32, #tpu.memory_space<vmem>>, vector<1x128xf32>,
    return
  }
  func.func @transform_0(%arg0: i32) -> (i32, i32) {
    %c0_i32 = arith.constant 0 : i32
    %c0_i32_0 = arith.constant 0 : i32
    return %arg0, %c0_i32 : i32, i32
  }
  func.func @transform_1(%arg0: i32) -> (i32, i32) {
    %c0_i32 = arith.constant 0 : i32
    %c0_i32_0 = arith.constant 0 : i32
    %c0_i32_1 = arith.constant 0 : i32
    return %c0_i32, %c0_i32_0 : i32, i32
  }
  func.func @transform_2(%arg0: i32) -> (i32, i32) {
    %c0_i32 = arith.constant 0 : i32
    %c0_i32_0 = arith.constant 0 : i32
    %c0_i32_1 = arith.constant 0 : i32
    return %c0_i32, %c0_i32_0 : i32, i32
  }
  func.func @transform_3(%arg0: i32) -> (i32, i32) {
    %c0_i32 = arith.constant 0 : i32
    %c0_i32_0 = arith.constant 0 : i32
    %c0_i32_1 = arith.constant 0 : i32
    return %c0_i32, %c0_i32_0 : i32, i32
  }
  func.func @transform_4(%arg0: i32) -> (i32, i32) {
    %c0_i32 = arith.constant 0 : i32
    %c0_i32_0 = arith.constant 0 : i32
    %c0_i32_1 = arith.constant 0 : i32
    return %c0_i32, %c0_i32_0 : i32, i32
  }
  func.func @transform_5(%arg0: i32) -> (i32, i32) {
    %c0_i32 = arith.constant 0 : i32
    %c0_i32_0 = arith.constant 0 : i32
    return %c0_i32, %arg0 : i32, i32
  }
}

</mosaic_0001>

<llo_original>
// kernel: tpu_custom_call.1
$region0: #{tpu_custom_call.1}
  #allocation0 [shape = 'u32[]', space=smem, size = 0x4, offset = 0x4, fixed_abs, tag = 'smem constant byte address 0x4 - core index']
  #allocation1 [shape = 'u32[72,128]{1,0:T(1,128)}', space=vmem, size = 0x9000, scoped, tag = 'internal scratch']
  #allocation2 [shape = 'f32[1,1]{1,0:T(1,128)S(1)}', space=vmem, size = 0x200, scoped, tag = 'scoped memory for tpu_custom_call.1']
  %s0 = inlined_call_operand.vmem [shape: f32[128,32], index: 0, kind: input, shape index: {}]
  %s1 = inlined_call_operand.vmem [shape: f32[32,32], index: 1, kind: input, shape index: {}]
  %s2 = inlined_call_operand.vmem [shape: f32[1,32], index: 2, kind: input, shape index: {}]
  %s3 = inlined_call_operand.vmem [shape: f32[1,32], index: 3, kind: input, shape index: {}]
  %s4 = inlined_call_operand.<no memory space> [shape: f32[1,1], index: 4, kind: input, shape index: {}]
  %s5 = inlined_call_operand.hbm [shape: f32[1,128], index: 5, kind: output, shape index: {}]
  %s6 = sld [smem:[#allocation0]]
  $region30: #{tpu_custom_call.1} parent=0
    _
  %s8 = ssub.s32 1, %s6
  %s9 = scalar_select 0, %s8, %s6
  %v10 = vstv %s4
  %11 = vst [vmem:[#allocation2] sm:$0x1] %v10
  $region1: #{tpu_custom_call.1} parent=0
    #allocation3 [shape = 'u8[512]{0}', space=vmem, size = 0x400, scoped, tag = 'output window, operand 0, single buffered']
    #allocation4 [shape = 's32[1]{0}', space=sflag, size = 0x4, scoped, tag = 'scoped memory for tpu_custom_call.1']
    %12 = vsyncpa [#allocation4], 0
    // Predicated region
    $region2: #{tpu_custom_call.1} parent=1 // pred_check
      _
    $region3: #{tpu_custom_call.1} parent=1 // pred_check_branch
      %14 = sbr.rel (0) target = $region5
    $region4: #{tpu_custom_call.1} parent=1 // pred_region
      _
    $region5: #{tpu_custom_call.1} parent=1 // pred_fallthru
      _
    // Predicated region
    $region6: #{tpu_custom_call.1} parent=1 // pred_check
      _
    $region7: #{tpu_custom_call.1} parent=1 // pred_check_branch
      %16 = sbr.rel (0) target = $region9
    $region8: #{tpu_custom_call.1} parent=1 // pred_region
      _
    $region9: #{tpu_custom_call.1} parent=1 // pred_fallthru
      _
    // Predicated region
    $region10: #{tpu_custom_call.1} parent=1 // pred_check
      _
    $region11: #{tpu_custom_call.1} parent=1 // pred_check_branch
      %18 = sbr.rel (0) target = $region13
    $region12: #{tpu_custom_call.1} parent=1 // pred_region
      _
    $region13: #{tpu_custom_call.1} parent=1 // pred_fallthru
      _
    // Predicated region
    $region14: #{tpu_custom_call.1} parent=1 // pred_check
      _
    $region15: #{tpu_custom_call.1} parent=1 // pred_check_branch
      %20 = sbr.rel (0) target = $region17
    $region16: #{tpu_custom_call.1} parent=1 // pred_region
      _
    $region17: #{tpu_custom_call.1} parent=1 // pred_fallthru
      _
    // Predicated region
    $region18: #{tpu_custom_call.1} parent=1 // pred_check
      _
    $region19: #{tpu_custom_call.1} parent=1 // pred_check_branch
      %22 = sbr.rel (0) target = $region21
    $region20: #{tpu_custom_call.1} parent=1 // pred_region
      _
    $region21: #{tpu_custom_call.1} parent=1 // pred_fallthru
      _
    %v23 = vld [vmem:[%s0] sm:$0xff]
    %v24 = vld [vmem:[%s0 + $0x8] sm:$0xff]
    %v25 = vld [vmem:[%s0 + $0x10] sm:$0xff]
    %v26 = vld [vmem:[%s0 + $0x18] sm:$0xff]
    %v27 = vld [vmem:[%s0 + $0x20] sm:$0xff]
    %v28 = vld [vmem:[%s0 + $0x28] sm:$0xff]
    %v29 = vld [vmem:[%s0 + $0x30] sm:$0xff]
    %v30 = vld [vmem:[%s0 + $0x38] sm:$0xff]
    %v31 = vld [vmem:[%s0 + $0x40] sm:$0xff]
    %v32 = vld [vmem:[%s0 + $0x48] sm:$0xff]
    %v33 = vld [vmem:[%s0 + $0x50] sm:$0xff]
    %v34 = vld [vmem:[%s0 + $0x58] sm:$0xff]
    %v35 = vld [vmem:[%s0 + $0x60] sm:$0xff]
    %v36 = vld [vmem:[%s0 + $0x68] sm:$0xff]
    %v37 = vld [vmem:[%s0 + $0x70] sm:$0xff]
    %v38 = vld [vmem:[%s0 + $0x78] sm:$0xff]
    %v39 = vld [vmem:[%s1] sm:$0xff]
    %v40 = vld [vmem:[%s1 + $0x8] sm:$0xff]
    %v41 = vld [vmem:[%s1 + $0x10] sm:$0xff]
    %v42 = vld [vmem:[%s1 + $0x18] sm:$0xff]
    %v43 = vld [vmem:[%s2] sm:$0x1]
    %v45 = vperm.slane %v43, 0
    %vm47 = vcmask 261120
    %v49 = vsel %vm47, %v23, 0
    %v52 = vsel %vm47, %v24, 0
    %v55 = vsel %vm47, %v25, 0
    %v58 = vsel %vm47, %v26, 0
    %v61 = vsel %vm47, %v27, 0
    %v64 = vsel %vm47, %v28, 0
    %v67 = vsel %vm47, %v29, 0
    %v70 = vsel %vm47, %v30, 0
    %v73 = vsel %vm47, %v31, 0
    %v76 = vsel %vm47, %v32, 0
    %v79 = vsel %vm47, %v33, 0
    %v82 = vsel %vm47, %v34, 0
    %v85 = vsel %vm47, %v35, 0
    %v88 = vsel %vm47, %v36, 0
    %v91 = vsel %vm47, %v37, 0
    %v94 = vsel %vm47, %v38, 0
    %96 = vmatpush.msra.mxu0 0.0
    %97 = vmatpush.msra.mxu0 0.0
    %98 = vmatpush.msra.mxu0 0.0
    %99 = vmatpush.msra.mxu0 0.0
    %100 = vmatpush.msra.mxu0 0.0
    %101 = vmatpush.msra.mxu0 0.0
    %102 = vmatpush.msra.mxu0 0.0
    %103 = vmatpush.msra.mxu0 0.0
    %104 = vmatpush.msra.mxu0 0.0
    %105 = vmatpush.msra.mxu0 0.0
    %106 = vmatpush.msra.mxu0 0.0
    %107 = vmatpush.msra.mxu0 0.0
    %108 = vmatpush.msra.mxu0 %v42
    %109 = vmatpush.msra.mxu0 %v41
    %110 = vmatpush.msra.mxu0 %v40
    %111 = vmatpush.msra.mxu0 %v39
    %112 = vmatmul.f32.gmra.mxu0 %v49
    %v113 = vpop.f32.mrf.mxu0
    %v114 = vadd.f32 %v45, %v113
    %115 = vmatmul.f32.gmra.mxu0 %v52
    %v116 = vpop.f32.mrf.mxu0
    %v117 = vadd.f32 %v45, %v116
    %118 = vmatmul.f32.gmra.mxu0 %v55
    %v119 = vpop.f32.mrf.mxu0
    %v120 = vadd.f32 %v45, %v119
    %121 = vmatmul.f32.gmra.mxu0 %v58
    %v122 = vpop.f32.mrf.mxu0
    %v123 = vadd.f32 %v45, %v122
    %124 = vmatmul.f32.gmra.mxu0 %v61
    %v125 = vpop.f32.mrf.mxu0
    %v126 = vadd.f32 %v45, %v125
    %127 = vmatmul.f32.gmra.mxu0 %v64
    %v128 = vpop.f32.mrf.mxu0
    %v129 = vadd.f32 %v45, %v128
    %130 = vmatmul.f32.gmra.mxu0 %v67
    %v131 = vpop.f32.mrf.mxu0
    %v132 = vadd.f32 %v45, %v131
    %133 = vmatmul.f32.gmra.mxu0 %v70
    %v134 = vpop.f32.mrf.mxu0
    %v135 = vadd.f32 %v45, %v134
    %136 = vmatmul.f32.gmra.mxu0 %v73
    %v137 = vpop.f32.mrf.mxu0
    %v138 = vadd.f32 %v45, %v137
    %139 = vmatmul.f32.gmra.mxu0 %v76
    %v140 = vpop.f32.mrf.mxu0
    %v141 = vadd.f32 %v45, %v140
    %142 = vmatmul.f32.gmra.mxu0 %v79
    %v143 = vpop.f32.mrf.mxu0
    %v144 = vadd.f32 %v45, %v143
    %145 = vmatmul.f32.gmra.mxu0 %v82
    %v146 = vpop.f32.mrf.mxu0
    %v147 = vadd.f32 %v45, %v146
    %148 = vmatmul.f32.gmra.mxu0 %v85
    %v149 = vpop.f32.mrf.mxu0
    %v150 = vadd.f32 %v45, %v149
    %151 = vmatmul.f32.gmra.mxu0 %v88
    %v152 = vpop.f32.mrf.mxu0
    %v153 = vadd.f32 %v45, %v152
    %154 = vmatmul.f32.gmra.mxu0 %v91
    %v155 = vpop.f32.mrf.mxu0
    %v156 = vadd.f32 %v45, %v155
    %157 = vmatmul.f32.gmra.mxu0 %v94
    %v158 = vpop.f32.mrf.mxu0
    %v159 = vadd.f32 %v45, %v158
    %160 = vdwg.mxu0
    %vm161 = vcmp.gt.f32.partialorder %v114, 0.0
    %vm162 = vcmp.gt.f32.partialorder %v117, 0.0
    %vm163 = vcmp.gt.f32.partialorder %v120, 0.0
    %vm164 = vcmp.gt.f32.partialorder %v123, 0.0
    %vm165 = vcmp.gt.f32.partialorder %v126, 0.0
    %vm166 = vcmp.gt.f32.partialorder %v129, 0.0
    %vm167 = vcmp.gt.f32.partialorder %v132, 0.0
    %vm168 = vcmp.gt.f32.partialorder %v135, 0.0
    %vm169 = vcmp.gt.f32.partialorder %v138, 0.0
    %vm170 = vcmp.gt.f32.partialorder %v141, 0.0
    %vm171 = vcmp.gt.f32.partialorder %v144, 0.0
    %vm172 = vcmp.gt.f32.partialorder %v147, 0.0
    %vm173 = vcmp.gt.f32.partialorder %v150, 0.0
    %vm174 = vcmp.gt.f32.partialorder %v153, 0.0
    %vm175 = vcmp.gt.f32.partialorder %v156, 0.0
    %vm176 = vcmp.gt.f32.partialorder %v159, 0.0
    %v177 = vmul.f32 %v114, 0.01
    %v178 = vmul.f32 %v117, 0.01
    %v179 = vmul.f32 %v120, 0.01
    %v180 = vmul.f32 %v123, 0.01
    %v181 = vmul.f32 %v126, 0.01
    %v182 = vmul.f32 %v129, 0.01
    %v183 = vmul.f32 %v132, 0.01
    %v184 = vmul.f32 %v135, 0.01
    %v185 = vmul.f32 %v138, 0.01
    %v186 = vmul.f32 %v141, 0.01
    %v187 = vmul.f32 %v144, 0.01
    %v188 = vmul.f32 %v147, 0.01
    %v189 = vmul.f32 %v150, 0.01
    %v190 = vmul.f32 %v153, 0.01
    %v191 = vmul.f32 %v156, 0.01
    %v192 = vmul.f32 %v159, 0.01
    %v193 = vsel %vm161, %v114, %v177
    %v194 = vsel %vm162, %v117, %v178
    %v195 = vsel %vm163, %v120, %v179
    %v196 = vsel %vm164, %v123, %v180
    %v197 = vsel %vm165, %v126, %v181
    %v198 = vsel %vm166, %v129, %v182
    %v199 = vsel %vm167, %v132, %v183
    %v200 = vsel %vm168, %v135, %v184
    %v201 = vsel %vm169, %v138, %v185
    %v202 = vsel %vm170, %v141, %v186
    %v203 = vsel %vm171, %v144, %v187
    %v204 = vsel %vm172, %v147, %v188
    %v205 = vsel %vm173, %v150, %v189
    %v206 = vsel %vm174, %v153, %v190
    %v207 = vsel %vm175, %v156, %v191
    %v208 = vsel %vm176, %v159, %v192
    %v209 = vld [vmem:[%s3] sm:$0x1]
    %v210 = vld [vmem:[#allocation2] sm:$0x1]
    %212 = vset.pattern.permute.xlu0 0
    %213 = vperm.xlu0 %212, %v210
    %v214 = vpop.permute.xlu0 %213
    %v216 = vperm.slane %v214, 0
    %v218 = vsel %vm47, %v209, 0
    %v221 = vsel %vm47, %v193, 0
    %v224 = vsel %vm47, %v194, 0
    %v227 = vsel %vm47, %v195, 0
    %v230 = vsel %vm47, %v196, 0
    %v233 = vsel %vm47, %v197, 0
    %v236 = vsel %vm47, %v198, 0
    %v239 = vsel %vm47, %v199, 0
    %v242 = vsel %vm47, %v200, 0
    %v245 = vsel %vm47, %v201, 0
    %v248 = vsel %vm47, %v202, 0
    %v251 = vsel %vm47, %v203, 0
    %v254 = vsel %vm47, %v204, 0
    %v257 = vsel %vm47, %v205, 0
    %v260 = vsel %vm47, %v206, 0
    %v263 = vsel %vm47, %v207, 0
    %v266 = vsel %vm47, %v208, 0
    %268 = vmatpush.xpose.msra.mxu0 %v266
    %269 = vmatpush.xpose.msra.mxu0 %v263
    %270 = vmatpush.xpose.msra.mxu0 %v260
    %271 = vmatpush.xpose.msra.mxu0 %v257
    %272 = vmatpush.xpose.msra.mxu0 %v254
    %273 = vmatpush.xpose.msra.mxu0 %v251
    %274 = vmatpush.xpose.msra.mxu0 %v248
    %275 = vmatpush.xpose.msra.mxu0 %v245
    %276 = vmatpush.xpose.msra.mxu0 %v242
    %277 = vmatpush.xpose.msra.mxu0 %v239
    %278 = vmatpush.xpose.msra.mxu0 %v236
    %279 = vmatpush.xpose.msra.mxu0 %v233
    %280 = vmatpush.xpose.msra.mxu0 %v230
    %281 = vmatpush.xpose.msra.mxu0 %v227
    %282 = vmatpush.xpose.msra.mxu0 %v224
    %283 = vmatpush.xpose.msra.mxu0 %v221
    %284 = vmatmul.f32.gmra.mxu0 %v218
    %v285 = vpop.f32.mrf.mxu0
    %v286 = vadd.f32 %v216, %v285
    %287 = vdwg.mxu0
    %288 = vst [vmem:[#allocation3] sm:$0x1] %v286
    // Predicated region
    $region22: #{tpu_custom_call.1} parent=1 // pred_check
      _
    $region23: #{tpu_custom_call.1} parent=1 // pred_check_branch
      %290 = sbr.rel (0) target = $region25
    $region24: #{tpu_custom_call.1} parent=1 // pred_region
      %292 = vsyncadd [#allocation4], 0
      %s294 = sshll.u32 [#allocation3], 4
      %s295 = int_to_ptr.vmem [resolvable:$true] %s294
      %s296 = sshll.u32 %s5, 4
      %s297 = int_to_ptr.hbm [resolvable:$true] %s296
      %299 = dma.vmem_to_hbm [thread:$0]  %s295, 16, %s297, [#allocation4]
    $region25: #{tpu_custom_call.1} parent=1 // pred_fallthru
      _
    // Predicated region
    $region26: #{tpu_custom_call.1} parent=1 // pred_check
      _
    $region27: #{tpu_custom_call.1} parent=1 // pred_check_branch
      %301 = sbr.rel (0) target = $region29
    $region28: #{tpu_custom_call.1} parent=1 // pred_region
      %303 = dma.done [#allocation4], 16
    $region29: #{tpu_custom_call.1} parent=1 // pred_fallthru
      _
    %304 = vsyncpa [#allocation4], 1

</llo_original>
